<compile_context>
chip_gen: v7x
topology: tpu7x:2x2x1
jax: 0.10.0
libtpu: 0.0.40
codegen_flags: <defaults>
</compile_context>

<pallas_src>
import math

import jax
import jax.numpy as jnp
from jax.experimental import pallas as pl
from jax.experimental.pallas import tpu as pltpu

LANE = 128      # vreg lane width
SUBLANE = 8     # f32 sublane count


def logreg_kernel(w_ref, b_ref, x_ref, o_ref):
    # w_ref / b_ref are (1, 1) f32 scalars in SMEM; x_ref / o_ref are
    # (block_rows, 128) lane-dense VMEM tiles.
    w = w_ref[0, 0]
    b = b_ref[0, 0]
    z = x_ref[...] * w + b            # Linear(1, 1): x @ W^T + b (scalar fma)
    o_ref[...] = jax.nn.sigmoid(z)    # EUP transcendental, no VALU divide


def logistic_regression_forward(x, weight, bias, *, block_rows=1024):
    """x: (N, 1) f32, weight: (1, 1) f32, bias: (1,) f32 -> (N, 1) f32."""
    orig_shape = x.shape
    assert orig_shape[-1] == 1, "Linear(1, 1) expects in_features == 1"
    n = math.prod(orig_shape)

    xf = x.reshape(-1).astype(jnp.float32)

    # Lane-dense slab: last dim = 128 lanes; rows padded so (block_rows, 128)
    # tiles divide the slab evenly (block_rows is kept a multiple of 8 sublanes).
    rows_needed = pl.cdiv(n, LANE)
    br = min(block_rows, max(SUBLANE, pl.cdiv(rows_needed, SUBLANE) * SUBLANE))
    rows = pl.cdiv(rows_needed, br) * br
    total = rows * LANE

    x2d = jnp.pad(xf, (0, total - n)).reshape(rows, LANE)

    w_smem = weight.reshape(1, 1).astype(jnp.float32)
    b_smem = bias.reshape(1, 1).astype(jnp.float32)

    out2d = pl.pallas_call(
        logreg_kernel,
        out_shape=jax.ShapeDtypeStruct((rows, LANE), jnp.float32),
        grid_spec=pltpu.PrefetchScalarGridSpec(
            num_scalar_prefetch=0,
            grid=(rows // br,),
            in_specs=[
                pl.BlockSpec(memory_space=pltpu.MemorySpace.SMEM),   # weight (1,1)
                pl.BlockSpec(memory_space=pltpu.MemorySpace.SMEM),   # bias   (1,1)
                pl.BlockSpec((br, LANE), lambda i: (i, 0)),          # x tile
            ],
            out_specs=pl.BlockSpec((br, LANE), lambda i: (i, 0)),
        ),
        compiler_params=pltpu.CompilerParams(
            dimension_semantics=("parallel",)),                      # shard over TCs (v7x)
    )(w_smem, b_smem, x2d)

    # Drop the padded tail and restore the original (N, 1) layout.
    return out2d.reshape(-1)[:n].reshape(orig_shape)


if __name__ == "__main__":
    key = jax.random.PRNGKey(0)
    kx, kw, kb, kx2 = jax.random.split(key, 4)

    # Deterministic params mimicking torch.nn.Linear(1, 1) uniform init.
    weight = jax.random.uniform(kw, (1, 1), minval=-1.0, maxval=1.0, dtype=jnp.float32)
    bias = jax.random.uniform(kb, (1,), minval=-1.0, maxval=1.0, dtype=jnp.float32)

    # Small batch consistent with the module: (batch, in_features) = (8, 1).
    x = jax.random.normal(kx, (8, 1), dtype=jnp.float32)
    y_hat = jax.block_until_ready(logistic_regression_forward(x, weight, bias))
    y_ref = jax.nn.sigmoid(x @ weight.T + bias)
    assert y_hat.shape == (8, 1)
    assert jnp.allclose(y_hat, y_ref, atol=1e-6), "mismatch vs reference (N=8)"

    # Second check: non-multiple-of-128 batch with a multi-step grid, to exercise
    # the lane-dense padding, tail slicing and pipelined tiling paths.
    x2 = jax.random.normal(kx2, (5000, 1), dtype=jnp.float32)
    y_hat2 = jax.block_until_ready(
        logistic_regression_forward(x2, weight, bias, block_rows=8))
    y_ref2 = jax.nn.sigmoid(x2 @ weight.T + bias)
    assert y_hat2.shape == (5000, 1)
    assert jnp.allclose(y_hat2, y_ref2, atol=1e-6), "mismatch vs reference (N=5000)"

    print("KERNEL_OK")
</pallas_src>

<mosaic_0001>
module attributes {stable_mosaic.version = 11 : i64} {
  func.func @logreg_kernel(%arg0: i32, %arg1: memref<1x1xf32, #tpu.memory_space<smem>>, %arg2: memref<1x1xf32, #tpu.memory_space<smem>>, %arg3: memref<8x128xf32, #tpu.memory_space<vmem>>, %arg4: memref<8x128xf32, #tpu.memory_space<vmem>>) attributes {dimension_semantics = [#tpu.dimension_semantics<parallel>], iteration_bounds = array<i64: 1>, scalar_prefetch = 0 : i64, scratch_operands = 0 : i64, tpu.core_type = #tpu.core_type<tc>, window_params = [{transform_indices = @transform_0, window_bounds = array<i64: 1, 1>}, {transform_indices = @transform_1, window_bounds = array<i64: 1, 1>}, {transform_indices = @transform_2, window_bounds = array<i64: 8, 128>}, {transform_indices = @transform_3, window_bounds = array<i64: 8, 128>}]} {
    %c0 = arith.constant 0 : index
    %c0_0 = arith.constant 0 : index
    %0 = memref.load %arg1[%c0, %c0_0] : memref<1x1xf32, #tpu.memory_space<smem>>
    %c0_1 = arith.constant 0 : index
    %c0_2 = arith.constant 0 : index
    %1 = memref.load %arg2[%c0_1, %c0_2] : memref<1x1xf32, #tpu.memory_space<smem>>
    %c0_3 = arith.constant 0 : index
    %c0_4 = arith.constant 0 : index
    %2 = vector.load %arg3[%c0_3, %c0_4] : memref<8x128xf32, #tpu.memory_space<vmem>>, vector<8x128xf32>
    %3 = vector.broadcast %0 : f32 to vector<8x128xf32>
    %4 = arith.mulf %2, %3 : vector<8x128xf32>
    %5 = vector.broadcast %1 : f32 to vector<8x128xf32>
    %6 = arith.addf %4, %5 : vector<8x128xf32>
    %7 = arith.negf %6 : vector<8x128xf32>
    %8 = math.exp %7 : vector<8x128xf32>
    %cst = arith.constant 1.000000e+00 : f32
    %9 = vector.broadcast %cst : f32 to vector<8x128xf32>
    %10 = arith.addf %9, %8 : vector<8x128xf32>
    %11 = arith.divf %9, %10 : vector<8x128xf32>
    %c0_5 = arith.constant 0 : index
    %c0_6 = arith.constant 0 : index
    %12 = vector.load %arg4[%c0_5, %c0_6] : memref<8x128xf32, #tpu.memory_space<vmem>>, vector<8x128xf32>
    tpu.vector_store %arg4[%c0_5, %c0_6], %11 {strides = array<i32>} : memref<8x128xf32, #tpu.memory_space<vmem>>, vector<8x128xf32>,
    return
  }
  func.func @transform_0(%arg0: i32) -> (i32, i32) {
    %c0_i32 = arith.constant 0 : i32
    %c0_i32_0 = arith.constant 0 : i32
    %c0_i32_1 = arith.constant 0 : i32
    return %c0_i32, %c0_i32_0 : i32, i32
  }
  func.func @transform_1(%arg0: i32) -> (i32, i32) {
    %c0_i32 = arith.constant 0 : i32
    %c0_i32_0 = arith.constant 0 : i32
    %c0_i32_1 = arith.constant 0 : i32
    return %c0_i32, %c0_i32_0 : i32, i32
  }
  func.func @transform_2(%arg0: i32) -> (i32, i32) {
    %c0_i32 = arith.constant 0 : i32
    %c0_i32_0 = arith.constant 0 : i32
    return %arg0, %c0_i32 : i32, i32
  }
  func.func @transform_3(%arg0: i32) -> (i32, i32) {
    %c0_i32 = arith.constant 0 : i32
    %c0_i32_0 = arith.constant 0 : i32
    return %arg0, %c0_i32 : i32, i32
  }
}

</mosaic_0001>

<llo_original>
// kernel: tpu_custom_call.1
$region0: #{tpu_custom_call.1}
  #allocation0 [shape = 'u32[]', space=smem, size = 0x4, offset = 0x4, fixed_abs, tag = 'smem constant byte address 0x4 - core index']
  #allocation1 [shape = 'u32[144,128]{1,0:T(1,128)}', space=vmem, size = 0x12000, scoped, tag = 'internal scratch']
  #allocation2 [shape = 'f32[1,1]{1,0:T(1,128)S(6)}', space=smem, size = 0x200, scoped, tag = 'scoped memory for tpu_custom_call.1']
  #allocation3 [shape = 'f32[1,1]{1,0:T(1,128)S(6)}', space=smem, size = 0x200, scoped, tag = 'scoped memory for tpu_custom_call.1']
  %s0 = inlined_call_operand.<no memory space> [shape: f32[1,1], index: 0, kind: input, shape index: {}]
  %s1 = inlined_call_operand.<no memory space> [shape: f32[1,1], index: 1, kind: input, shape index: {}]
  %s2 = inlined_call_operand.hbm [shape: f32[8,128], index: 2, kind: input, shape index: {}]
  %s3 = inlined_call_operand.hbm [shape: f32[8,128], index: 3, kind: output, shape index: {}]
  %s4 = sld [smem:[#allocation0]]
  $region26: #{tpu_custom_call.1} parent=0
    _
  %s6 = ssub.s32 1, %s4
  %s7 = scalar_select 0, %s6, %s4
  %8 = sst [smem:[#allocation2]] %s0
  %9 = sst [smem:[#allocation3]] %s1
  $region1: #{tpu_custom_call.1} parent=0
    #allocation4 [shape = 'u8[4096]{0}', space=vmem, size = 0x1000, scoped, tag = 'input window, operand 2, single buffered']
    #allocation5 [shape = 's32[1]{0}', space=sflag, size = 0x4, scoped, tag = 'scoped memory for tpu_custom_call.1']
    #allocation6 [shape = 's32[1]{0}', space=sflag, size = 0x4, scoped, tag = 'scoped memory for tpu_custom_call.1']
    #allocation7 [shape = 'u8[4096]{0}', space=vmem, size = 0x1000, scoped, tag = 'output window, operand 0, single buffered']
    %10 = vsyncpa [#allocation5], 0
    %11 = vsyncpa [#allocation6], 0
    // Predicated region
    $region2: #{tpu_custom_call.1} parent=1 // pred_check
      _
    $region3: #{tpu_custom_call.1} parent=1 // pred_check_branch
      %13 = sbr.rel (0) target = $region5
    $region4: #{tpu_custom_call.1} parent=1 // pred_region
      _
    $region5: #{tpu_custom_call.1} parent=1 // pred_fallthru
      _
    // Predicated region
    $region6: #{tpu_custom_call.1} parent=1 // pred_check
      _
    $region7: #{tpu_custom_call.1} parent=1 // pred_check_branch
      %15 = sbr.rel (0) target = $region9
    $region8: #{tpu_custom_call.1} parent=1 // pred_region
      _
    $region9: #{tpu_custom_call.1} parent=1 // pred_fallthru
      _
    // Predicated region
    $region10: #{tpu_custom_call.1} parent=1 // pred_check
      _
    $region11: #{tpu_custom_call.1} parent=1 // pred_check_branch
      %17 = sbr.rel (0) target = $region13
    $region12: #{tpu_custom_call.1} parent=1 // pred_region
      %s19 = ssub.s32 128, 128
      %20 = vsyncadd [#allocation5], %s19
      %s22 = sshll.u32 [#allocation4], 4
      %s23 = int_to_ptr.vmem [resolvable:$true] %s22
      %25 = dma.hbm_to_vmem [thread:$0]  %s2, 128, %s23, [#allocation5]
    $region13: #{tpu_custom_call.1} parent=1 // pred_fallthru
      _
    // Predicated region
    $region14: #{tpu_custom_call.1} parent=1 // pred_check
      _
    $region15: #{tpu_custom_call.1} parent=1 // pred_check_branch
      %27 = sbr.rel (0) target = $region17
    $region16: #{tpu_custom_call.1} parent=1 // pred_region
      %28 = dma.done [#allocation5], 128
    $region17: #{tpu_custom_call.1} parent=1 // pred_fallthru
      _
    %s29 = sld [smem:[#allocation2]]
    %s30 = sld [smem:[#allocation3]]
    %v31 = vld [vmem:[#allocation4] sm:$0xff]
    %v32 = vstv %s29
    %v33 = vmul.f32 %v31, %v32
    %v34 = vstv %s30
    %v35 = vadd.f32 %v33, %v34
    %v36 = vxor.u32 %v35, 2147483648
    %v37 = vmul.f32 %v36, 1.442695
    %v38 = vpow.pop %v37
    %v39 = vadd.f32 %v38, 1.0
    %v40 = vrcp.pop %v39
    %v41 = vmul.f32 1.0, %v40
    %42 = vst [vmem:[#allocation7] sm:$0xff] %v41
    // Predicated region
    $region18: #{tpu_custom_call.1} parent=1 // pred_check
      _
    $region19: #{tpu_custom_call.1} parent=1 // pred_check_branch
      %44 = sbr.rel (0) target = $region21
    $region20: #{tpu_custom_call.1} parent=1 // pred_region
      %s46 = ssub.s32 128, 128
      %47 = vsyncadd [#allocation6], %s46
      %s49 = sshll.u32 [#allocation7], 4
      %s50 = int_to_ptr.vmem [resolvable:$true] %s49
      %52 = dma.vmem_to_hbm [thread:$0]  %s50, 128, %s3, [#allocation6]
    $region21: #{tpu_custom_call.1} parent=1 // pred_fallthru
      _
    // Predicated region
    $region22: #{tpu_custom_call.1} parent=1 // pred_check
      _
    $region23: #{tpu_custom_call.1} parent=1 // pred_check_branch
      %54 = sbr.rel (0) target = $region25
    $region24: #{tpu_custom_call.1} parent=1 // pred_region
      %55 = dma.done [#allocation6], 128
    $region25: #{tpu_custom_call.1} parent=1 // pred_fallthru
      _
    %56 = vsyncpa [#allocation5], 1
    %57 = vsyncpa [#allocation6], 1

</llo_original>
